<compile_context>
chip_gen: v6e
topology: v6e:2x2x1
jax: 0.10.0
libtpu: 0.0.40
codegen_flags: <defaults>
</compile_context>

<pallas_src>
import functools

import jax
import jax.numpy as jnp
from jax.experimental import pallas as pl
from jax.experimental.pallas import tpu as pltpu


def _parse_name(name: str):
    digits = "".join(s for s in name if s.isdigit())
    return int(digits), ("d" in name)


def _generation_config():
    """(generation, per-input-block byte budget, vmem_limit_bytes or None)."""
    gen = "unknown"
    try:
        kind = jax.devices()[0].device_kind.lower()
        if "v5 lite" in kind or "v5e" in kind or "v5litepod" in kind:
            gen = "v5e"
        elif "v6" in kind:
            gen = "v6e"
        elif "v7" in kind:
            gen = "v7x"
    except Exception:  # detection failure -> conservative defaults
        pass
    if gen == "v5e":                       # 128 MiB physical VMEM, ~820 GB/s HBM
        return gen, 1 << 20, 64 << 20
    if gen == "v6e":                       # 128 MiB physical VMEM
        return gen, 2 << 20, 64 << 20
    if gen == "v7x":                       # only 64 MiB physical VMEM per TC
        return gen, (3 << 20) // 2, 48 << 20
    # Unknown chip: stay inside the smallest default scoped-VMEM limit (16 MiB).
    return gen, 768 * 1024, None


def _pick_images_per_block(M, H, W, layout, budget_bytes):
    """Images per block: largest aligned divisor of M within the VMEM budget,
    preferring >= 2 blocks so the 'parallel' grid axis shards across both
    v7x TensorCores (no effect on single-TC v5e/v6e)."""
    bytes_per_img = H * W * 4
    max_imgs = max(1, budget_bytes // bytes_per_img)

    def aligned(g):
        if g == M:            # block == full array: always layout-legal
            return True
        if layout == "A":     # tiled along lanes -> (8,128) rule on g*W
            return (g * W) % 128 == 0
        return (g * H) % 8 == 0   # tiled along sublanes

    divisors = [g for g in range(1, M + 1) if M % g == 0 and aligned(g)]
    feasible = [g for g in divisors if g <= max_imgs]
    multi = [g for g in feasible if M // g >= 2]
    if multi:
        return max(multi)
    if feasible:
        return max(feasible)
    # TODO(synk): pad the image axis instead of overrunning the budget here.
    return min(divisors)


def _window_sum(a, k, axis, length):
    """b[i] = sum_{d=0..k-1} a[(i+d) mod length] along `axis`.

    Log-step (doubling) construction: ~ceil(log2 k) roll+add passes instead of
    k-1.  Wraparound / cross-image garbage only lands at positions the
    validity mask discards (valid positions never read past an image edge)."""
    if k == 1:
        return a
    result = None
    covered = 0
    s = a          # windowed sum of width `span`
    span = 1
    rem = k
    while rem:
        if rem & 1:
            part = s if covered == 0 else pltpu.roll(s, length - covered, axis=axis)
            result = part if result is None else result + part
            covered += span
        rem >>= 1
        if rem:
            s = s + pltpu.roll(s, length - span, axis=axis)
            span *= 2
    return result


def _make_kernel(k, rows, lanes):
    inv_w2 = 1.0 / float(k * k)
    eps = 0.0001

    def pool(a):
        # Separable stride-1 k x k sum pooling (lanes then sublanes), scaled to
        # a mean.  Pooling each statistic map separately (no 4-way sublane
        # concat) keeps peak temporaries small so blocks can be large.
        a = _window_sum(a, k, axis=1, length=lanes)
        a = _window_sum(a, k, axis=0, length=rows)
        return a * inv_w2

    def kernel(x_ref, y_ref, mask_ref, out_ref):
        x = x_ref[...].astype(jnp.float32)
        y = y_ref[...].astype(jnp.float32)

        x_mean = pool(x)
        x2_mean = pool(x * x)
        y_mean = pool(y)
        y2_mean = pool(y * y)

        # clamp: fp rounding can make E[x^2]-E[x]^2 slightly negative -> NaN.
        var_x = jnp.maximum(x2_mean - x_mean * x_mean, 0.0)
        var_y = jnp.maximum(y2_mean - y_mean * y_mean, 0.0)
        x_sigma = jnp.sqrt(var_x) + eps
        y_sigma = jnp.sqrt(var_y) + eps

        # EUP approx reciprocals (otherwise-idle slot); the two logs of the
        # reference are merged into a single log.
        inv_2xs2 = 0.5 * pl.reciprocal(x_sigma * x_sigma, approx=True)
        diff = x_mean - y_mean
        loss = (y_sigma * y_sigma + diff * diff) * inv_2xs2
        loss = loss + jnp.log(x_sigma * pl.reciprocal(y_sigma, approx=True)) - 0.5

        # Resident 0/1 validity mask (loss is finite everywhere, so a plain
        # multiply is safe); reduce over sublanes only -> lane-dense store.
        partial = jnp.sum(loss * mask_ref[...], axis=0, keepdims=True)
        out_ref[...] = partial.reshape(1, 1, lanes)

    return kernel


@functools.partial(jax.jit, static_argnames=("name",))
def local_stat_loss(x, y, name: str):
    window_size, dense = _parse_name(name)
    if not dense:
        # TODO(synk): non-dense path is a TypeError (None * int) in the PyTorch
        # reference; nothing to reproduce.
        raise NotImplementedError("non-dense LocalStat is not realizable")

    B, C, H, W = x.shape
    By, Cy, Hy, Wy = y.shape
    assert (B, C) == (By, Cy)
    assert (H, W) == (Hy, Wy), "only scale == 1 (equal resolutions) implemented"
    assert H >= window_size and W >= window_size

    k = window_size
    oh, ow = H - k + 1, W - k + 1
    M = B * C
    xf = x.reshape(M, H, W)
    yf = y.reshape(M, H, W)

    gen, budget, vmem_limit = _generation_config()

    # Layout A: images packed side by side along lanes (lane-dense for narrow
    # W; costs one wrapper transpose).  Layout B: images stacked along
    # sublanes (free reshape) when W is already lane-dense.
    # TODO(synk): on v5e prefer an in-kernel einshape packing over the layout-A
    # wrapper transpose (extra HBM pass on the bandwidth-poorest chip).
    layout = "A" if W < 128 else "B"
    G = _pick_images_per_block(M, H, W, layout, budget)
    num_blocks = M // G

    if layout == "A":
        xs = jnp.transpose(xf, (1, 0, 2)).reshape(H, M * W)
        ys = jnp.transpose(yf, (1, 0, 2)).reshape(H, M * W)
        rows, lanes = H, G * W
        in_spec = pl.BlockSpec((H, G * W), lambda g: (0, g))
    else:
        xs = xf.reshape(M * H, W)
        ys = yf.reshape(M * H, W)
        rows, lanes = G * H, W
        in_spec = pl.BlockSpec((G * H, W), lambda g: (g, 0))

    # Static validity mask (windows fully inside one image); constant index_map
    # keeps it resident -- the same mask is correct for every block.
    r_i = jnp.arange(rows, dtype=jnp.int32)
    c_i = jnp.arange(lanes, dtype=jnp.int32)
    mask = (((r_i[:, None] % H) < oh) & ((c_i[None, :] % W) < ow)).astype(jnp.float32)
    mask_spec = pl.BlockSpec((rows, lanes), lambda g: (0, 0))

    kernel = _make_kernel(k, rows, lanes)

    cp_kwargs = dict(dimension_semantics=("parallel",))
    if vmem_limit is not None:
        cp_kwargs["vmem_limit_bytes"] = int(vmem_limit)

    partials = pl.pallas_call(
        kernel,
        out_shape=jax.ShapeDtypeStruct((num_blocks, 1, lanes), jnp.float32),
        grid=(num_blocks,),
        in_specs=[in_spec, in_spec, mask_spec],
        out_specs=pl.BlockSpec((1, 1, lanes), lambda g: (g, 0, 0)),
        compiler_params=pltpu.CompilerParams(**cp_kwargs),
    )(xs, ys, mask)

    count = float(M * oh * ow)
    return jnp.sum(partials) / count


def _reference_loss(x, y, name: str):
    """Pure-JAX reference mirroring the PyTorch module (dense, scale=1)."""
    window_size, _ = _parse_name(name)

    def pool(a):
        s = jax.lax.reduce_window(
            a, 0.0, jax.lax.add,
            window_dimensions=(1, 1, window_size, window_size),
            window_strides=(1, 1, 1, 1), padding="VALID")
        return s / float(window_size * window_size)

    eps = 0.0001
    x_mean, x2_mean = pool(x), pool(x * x)
    y_mean, y2_mean = pool(y), pool(y * y)
    x_sigma = jnp.sqrt(x2_mean - x_mean ** 2) + eps
    y_sigma = jnp.sqrt(y2_mean - y_mean ** 2) + eps
    loss = (y_sigma ** 2 + (x_mean - y_mean) ** 2) / (2.0 * x_sigma ** 2)
    loss = loss + jnp.log(x_sigma / y_sigma) - 0.5
    return jnp.mean(loss)


if __name__ == "__main__":
    name = "lstat4d"  # window_size = 4, dense = True (no learnable params)

    key = jax.random.PRNGKey(0)
    kx, ky = jax.random.split(key)
    x = jax.random.normal(kx, (2, 4, 16, 16), dtype=jnp.float32)
    y = jax.random.normal(ky, (2, 4, 16, 16), dtype=jnp.float32) * 0.5 + 0.1

    out = jax.block_until_ready(local_stat_loss(x, y, name))
    ref = jax.block_until_ready(_reference_loss(x, y, name))

    # tolerance leaves headroom for the two EUP approx reciprocals
    assert jnp.isfinite(out), out
    assert jnp.allclose(out, ref, rtol=5e-3, atol=5e-3), (out, ref)

    print("KERNEL_OK")
</pallas_src>

<mosaic_0001>
module attributes {stable_mosaic.version = 11 : i64} {
  func.func @kernel(%arg0: i32, %arg1: memref<16x128xf32, #tpu.memory_space<vmem>>, %arg2: memref<16x128xf32, #tpu.memory_space<vmem>>, %arg3: memref<16x128xf32, #tpu.memory_space<vmem>>, %arg4: memref<1x1x128xf32, #tpu.memory_space<vmem>>) attributes {dimension_semantics = [#tpu.dimension_semantics<parallel>], iteration_bounds = array<i64: 1>, scalar_prefetch = 0 : i64, scratch_operands = 0 : i64, tpu.core_type = #tpu.core_type<tc>, window_params = [{transform_indices = @transform_0, window_bounds = array<i64: 16, 128>}, {transform_indices = @transform_1, window_bounds = array<i64: 16, 128>}, {pipeline_mode = #tpu.pipeline_mode<synchronous>, transform_indices = @transform_2, window_bounds = array<i64: 16, 128>}, {transform_indices = @transform_3, window_bounds = array<i64: 1, 1, 128>}]} {
    %c0 = arith.constant 0 : index
    %c0_0 = arith.constant 0 : index
    %0 = vector.load %arg1[%c0, %c0_0] : memref<16x128xf32, #tpu.memory_space<vmem>>, vector<16x128xf32>
    %c0_1 = arith.constant 0 : index
    %c0_2 = arith.constant 0 : index
    %1 = vector.load %arg2[%c0_1, %c0_2] : memref<16x128xf32, #tpu.memory_space<vmem>>, vector<16x128xf32>
    %c127_i32 = arith.constant 127 : i32
    %2 = tpu.dynamic_rotate %0 by %c127_i32 dim 1 : vector<16x128xf32>, i32 -> vector<16x128xf32>
    %3 = arith.addf %0, %2 : vector<16x128xf32>
    %c126_i32 = arith.constant 126 : i32
    %4 = tpu.dynamic_rotate %3 by %c126_i32 dim 1 : vector<16x128xf32>, i32 -> vector<16x128xf32>
    %5 = arith.addf %3, %4 : vector<16x128xf32>
    %c15_i32 = arith.constant 15 : i32
    %6 = tpu.dynamic_rotate %5 by %c15_i32 dim 0 : vector<16x128xf32>, i32 -> vector<16x128xf32>
    %7 = arith.addf %5, %6 : vector<16x128xf32>
    %c14_i32 = arith.constant 14 : i32
    %8 = tpu.dynamic_rotate %7 by %c14_i32 dim 0 : vector<16x128xf32>, i32 -> vector<16x128xf32>
    %9 = arith.addf %7, %8 : vector<16x128xf32>
    %cst = arith.constant 6.250000e-02 : f32
    %10 = vector.broadcast %cst : f32 to vector<16x128xf32>
    %11 = arith.mulf %9, %10 : vector<16x128xf32>
    %12 = arith.mulf %0, %0 : vector<16x128xf32>
    %c127_i32_3 = arith.constant 127 : i32
    %13 = tpu.dynamic_rotate %12 by %c127_i32_3 dim 1 : vector<16x128xf32>, i32 -> vector<16x128xf32>
    %14 = arith.addf %12, %13 : vector<16x128xf32>
    %c126_i32_4 = arith.constant 126 : i32
    %15 = tpu.dynamic_rotate %14 by %c126_i32_4 dim 1 : vector<16x128xf32>, i32 -> vector<16x128xf32>
    %16 = arith.addf %14, %15 : vector<16x128xf32>
    %c15_i32_5 = arith.constant 15 : i32
    %17 = tpu.dynamic_rotate %16 by %c15_i32_5 dim 0 : vector<16x128xf32>, i32 -> vector<16x128xf32>
    %18 = arith.addf %16, %17 : vector<16x128xf32>
    %c14_i32_6 = arith.constant 14 : i32
    %19 = tpu.dynamic_rotate %18 by %c14_i32_6 dim 0 : vector<16x128xf32>, i32 -> vector<16x128xf32>
    %20 = arith.addf %18, %19 : vector<16x128xf32>
    %cst_7 = arith.constant 6.250000e-02 : f32
    %21 = vector.broadcast %cst_7 : f32 to vector<16x128xf32>
    %22 = arith.mulf %20, %21 : vector<16x128xf32>
    %c127_i32_8 = arith.constant 127 : i32
    %23 = tpu.dynamic_rotate %1 by %c127_i32_8 dim 1 : vector<16x128xf32>, i32 -> vector<16x128xf32>
    %24 = arith.addf %1, %23 : vector<16x128xf32>
    %c126_i32_9 = arith.constant 126 : i32
    %25 = tpu.dynamic_rotate %24 by %c126_i32_9 dim 1 : vector<16x128xf32>, i32 -> vector<16x128xf32>
    %26 = arith.addf %24, %25 : vector<16x128xf32>
    %c15_i32_10 = arith.constant 15 : i32
    %27 = tpu.dynamic_rotate %26 by %c15_i32_10 dim 0 : vector<16x128xf32>, i32 -> vector<16x128xf32>
    %28 = arith.addf %26, %27 : vector<16x128xf32>
    %c14_i32_11 = arith.constant 14 : i32
    %29 = tpu.dynamic_rotate %28 by %c14_i32_11 dim 0 : vector<16x128xf32>, i32 -> vector<16x128xf32>
    %30 = arith.addf %28, %29 : vector<16x128xf32>
    %cst_12 = arith.constant 6.250000e-02 : f32
    %31 = vector.broadcast %cst_12 : f32 to vector<16x128xf32>
    %32 = arith.mulf %30, %31 : vector<16x128xf32>
    %33 = arith.mulf %1, %1 : vector<16x128xf32>
    %c127_i32_13 = arith.constant 127 : i32
    %34 = tpu.dynamic_rotate %33 by %c127_i32_13 dim 1 : vector<16x128xf32>, i32 -> vector<16x128xf32>
    %35 = arith.addf %33, %34 : vector<16x128xf32>
    %c126_i32_14 = arith.constant 126 : i32
    %36 = tpu.dynamic_rotate %35 by %c126_i32_14 dim 1 : vector<16x128xf32>, i32 -> vector<16x128xf32>
    %37 = arith.addf %35, %36 : vector<16x128xf32>
    %c15_i32_15 = arith.constant 15 : i32
    %38 = tpu.dynamic_rotate %37 by %c15_i32_15 dim 0 : vector<16x128xf32>, i32 -> vector<16x128xf32>
    %39 = arith.addf %37, %38 : vector<16x128xf32>
    %c14_i32_16 = arith.constant 14 : i32
    %40 = tpu.dynamic_rotate %39 by %c14_i32_16 dim 0 : vector<16x128xf32>, i32 -> vector<16x128xf32>
    %41 = arith.addf %39, %40 : vector<16x128xf32>
    %cst_17 = arith.constant 6.250000e-02 : f32
    %42 = vector.broadcast %cst_17 : f32 to vector<16x128xf32>
    %43 = arith.mulf %41, %42 : vector<16x128xf32>
    %44 = arith.mulf %11, %11 : vector<16x128xf32>
    %45 = arith.subf %22, %44 : vector<16x128xf32>
    %cst_18 = arith.constant 0.000000e+00 : f32
    %46 = vector.broadcast %cst_18 : f32 to vector<16x128xf32>
    %47 = arith.maximumf %45, %46 : vector<16x128xf32>
    %48 = arith.mulf %32, %32 : vector<16x128xf32>
    %49 = arith.subf %43, %48 : vector<16x128xf32>
    %cst_19 = arith.constant 0.000000e+00 : f32
    %50 = vector.broadcast %cst_19 : f32 to vector<16x128xf32>
    %51 = arith.maximumf %49, %50 : vector<16x128xf32>
    %52 = math.sqrt %47 : vector<16x128xf32>
    %cst_20 = arith.constant 9.99999974E-5 : f32
    %53 = vector.broadcast %cst_20 : f32 to vector<16x128xf32>
    %54 = arith.addf %52, %53 : vector<16x128xf32>
    %55 = math.sqrt %51 : vector<16x128xf32>
    %cst_21 = arith.constant 9.99999974E-5 : f32
    %56 = vector.broadcast %cst_21 : f32 to vector<16x128xf32>
    %57 = arith.addf %55, %56 : vector<16x128xf32>
    %58 = arith.mulf %54, %54 : vector<16x128xf32>
    %59 = tpu.reciprocal %58 {approx = true} : vector<16x128xf32> -> vector<16x128xf32>
    %cst_22 = arith.constant 5.000000e-01 : f32
    %60 = vector.broadcast %cst_22 : f32 to vector<16x128xf32>
    %61 = arith.mulf %60, %59 : vector<16x128xf32>
    %62 = arith.subf %11, %32 : vector<16x128xf32>
    %63 = arith.mulf %57, %57 : vector<16x128xf32>
    %64 = arith.mulf %62, %62 : vector<16x128xf32>
    %65 = arith.addf %63, %64 : vector<16x128xf32>
    %66 = arith.mulf %65, %61 : vector<16x128xf32>
    %67 = tpu.reciprocal %57 {approx = true} : vector<16x128xf32> -> vector<16x128xf32>
    %68 = arith.mulf %54, %67 : vector<16x128xf32>
    %69 = math.log %68 : vector<16x128xf32>
    %70 = arith.addf %66, %69 : vector<16x128xf32>
    %cst_23 = arith.constant 5.000000e-01 : f32
    %71 = vector.broadcast %cst_23 : f32 to vector<16x128xf32>
    %72 = arith.subf %70, %71 : vector<16x128xf32>
    %c0_24 = arith.constant 0 : index
    %c0_25 = arith.constant 0 : index
    %73 = vector.load %arg3[%c0_24, %c0_25] : memref<16x128xf32, #tpu.memory_space<vmem>>, vector<16x128xf32>
    %74 = arith.mulf %72, %73 : vector<16x128xf32>
    %cst_26 = arith.constant dense<0.000000e+00> : vector<128xf32>
    %75 = vector.multi_reduction <add>, %74, %cst_26 [0] : vector<16x128xf32> to vector<128xf32>
    %76 = vector.shape_cast %75 : vector<128xf32> to vector<1x128xf32>
    %77 = vector.shape_cast %76 : vector<1x128xf32> to vector<1x1x128xf32>
    %c0_27 = arith.constant 0 : index
    %c0_28 = arith.constant 0 : index
    %c0_29 = arith.constant 0 : index
    %78 = vector.load %arg4[%c0_27, %c0_28, %c0_29] : memref<1x1x128xf32, #tpu.memory_space<vmem>>, vector<1x1x128xf32>
    tpu.vector_store %arg4[%c0_27, %c0_28, %c0_29], %77 {strides = array<i32>} : memref<1x1x128xf32, #tpu.memory_space<vmem>>, vector<1x1x128xf32>,
    return
  }
  func.func @transform_0(%arg0: i32) -> (i32, i32) {
    %c0_i32 = arith.constant 0 : i32
    %c0_i32_0 = arith.constant 0 : i32
    return %c0_i32, %arg0 : i32, i32
  }
  func.func @transform_1(%arg0: i32) -> (i32, i32) {
    %c0_i32 = arith.constant 0 : i32
    %c0_i32_0 = arith.constant 0 : i32
    return %c0_i32, %arg0 : i32, i32
  }
  func.func @transform_2(%arg0: i32) -> (i32, i32) {
    %c0_i32 = arith.constant 0 : i32
    %c0_i32_0 = arith.constant 0 : i32
    %c0_i32_1 = arith.constant 0 : i32
    return %c0_i32, %c0_i32_0 : i32, i32
  }
  func.func @transform_3(%arg0: i32) -> (i32, i32, i32) {
    %c0_i32 = arith.constant 0 : i32
    %c0_i32_0 = arith.constant 0 : i32
    %c0_i32_1 = arith.constant 0 : i32
    return %arg0, %c0_i32, %c0_i32_0 : i32, i32, i32
  }
}

</mosaic_0001>

<llo_original>
// kernel: local_stat_loss.1
$region0: #{local_stat_loss.1}
  #allocation0 [shape = 'u32[]', space=smem, size = 0x4, offset = 0x4, fixed_abs, tag = 'smem constant byte address 0x4 - core index']
  #allocation1 [shape = 'u32[144,128]{1,0:T(1,128)}', space=vmem, size = 0x12000, scoped, tag = 'internal scratch']
  %s0 = inlined_call_operand.vmem [shape: f32[16,128], index: 0, kind: input, shape index: {}]
  %s1 = inlined_call_operand.vmem [shape: f32[16,128], index: 1, kind: input, shape index: {}]
  %s2 = inlined_call_operand.vmem [shape: f32[16,128], index: 2, kind: input, shape index: {}]
  %s3 = inlined_call_operand.vmem [shape: f32[1,1,128], index: 3, kind: output, shape index: {}]
  %s4 = sld [smem:[#allocation0]]
  $region22: #{local_stat_loss.1} parent=0
    _
  %s6 = ssub.s32 1, %s4
  %s7 = scalar_select 0, %s6, %s4
  // Predicated region
  $region2: #{local_stat_loss.1} parent=0 // pred_check
    _
  $region3: #{local_stat_loss.1} parent=0 // pred_check_branch
    %9 = sbr.rel (0) target = $region5
  $region4: #{local_stat_loss.1} parent=0 // pred_region
    _
  $region5: #{local_stat_loss.1} parent=0 // pred_fallthru
    _
  // Predicated region
  $region6: #{local_stat_loss.1} parent=0 // pred_check
    _
  $region7: #{local_stat_loss.1} parent=0 // pred_check_branch
    %11 = sbr.rel (0) target = $region9
  $region8: #{local_stat_loss.1} parent=0 // pred_region
    _
  $region9: #{local_stat_loss.1} parent=0 // pred_fallthru
    _
  // Predicated region
  $region10: #{local_stat_loss.1} parent=0 // pred_check
    _
  $region11: #{local_stat_loss.1} parent=0 // pred_check_branch
    %13 = sbr.rel (0) target = $region13
  $region12: #{local_stat_loss.1} parent=0 // pred_region
    _
  $region13: #{local_stat_loss.1} parent=0 // pred_fallthru
    _
  %v14 = vld [vmem:[%s0] sm:$0xff]
  %v15 = vld [vmem:[%s0 + $0x8] sm:$0xff]
  %v16 = vld [vmem:[%s1] sm:$0xff]
  %v17 = vld [vmem:[%s1 + $0x8] sm:$0xff]
  %18 = vrot.lane.b32.xlu0 %v14, 127
  %v19 = vpop.permute.xlu0 %18
  %20 = vrot.lane.b32.xlu0 %v15, 127
  %v21 = vpop.permute.xlu0 %20
  %v22 = vadd.f32 %v14, %v19
  %v23 = vadd.f32 %v15, %v21
  %24 = vrot.lane.b32.xlu0 %v22, 126
  %v25 = vpop.permute.xlu0 %24
  %26 = vrot.lane.b32.xlu0 %v23, 126
  %v27 = vpop.permute.xlu0 %26
  %v28 = vadd.f32 %v22, %v25
  %v29 = vadd.f32 %v23, %v27
  %v30 = vrot.slane %v28, 1
  %v31 = vrot.slane %v29, 1
  %v32 = vlaneseq
  %v33 = vshrl.u32 %v32, 7
  %vm34 = vcmp.lt.s32.totalorder %v33, 7
  %v35 = vsel %vm34, %v30, %v31
  %v36 = vsel %vm34, %v31, %v30
  %v37 = vadd.f32 %v28, %v35
  %v38 = vadd.f32 %v29, %v36
  %v39 = vrot.slane %v37, 2
  %v40 = vrot.slane %v38, 2
  %vm41 = vcmp.lt.s32.totalorder %v33, 6
  %v42 = vsel %vm41, %v39, %v40
  %v43 = vsel %vm41, %v40, %v39
  %v44 = vadd.f32 %v37, %v42
  %v45 = vadd.f32 %v38, %v43
  %v46 = vmul.f32 %v44, 0.0625
  %v47 = vmul.f32 %v45, 0.0625
  %v48 = vmul.f32 %v14, %v14
  %v49 = vmul.f32 %v15, %v15
  %50 = vrot.lane.b32.xlu0 %v48, 127
  %v51 = vpop.permute.xlu0 %50
  %52 = vrot.lane.b32.xlu0 %v49, 127
  %v53 = vpop.permute.xlu0 %52
  %v54 = vadd.f32 %v48, %v51
  %v55 = vadd.f32 %v49, %v53
  %56 = vrot.lane.b32.xlu0 %v54, 126
  %v57 = vpop.permute.xlu0 %56
  %58 = vrot.lane.b32.xlu0 %v55, 126
  %v59 = vpop.permute.xlu0 %58
  %v60 = vadd.f32 %v54, %v57
  %v61 = vadd.f32 %v55, %v59
  %v62 = vrot.slane %v60, 1
  %v63 = vrot.slane %v61, 1
  %v64 = vsel %vm34, %v62, %v63
  %v65 = vsel %vm34, %v63, %v62
  %v66 = vadd.f32 %v60, %v64
  %v67 = vadd.f32 %v61, %v65
  %v68 = vrot.slane %v66, 2
  %v69 = vrot.slane %v67, 2
  %v70 = vsel %vm41, %v68, %v69
  %v71 = vsel %vm41, %v69, %v68
  %v72 = vadd.f32 %v66, %v70
  %v73 = vadd.f32 %v67, %v71
  %v74 = vmul.f32 %v72, 0.0625
  %v75 = vmul.f32 %v73, 0.0625
  %76 = vrot.lane.b32.xlu0 %v16, 127
  %v77 = vpop.permute.xlu0 %76
  %78 = vrot.lane.b32.xlu0 %v17, 127
  %v79 = vpop.permute.xlu0 %78
  %v80 = vadd.f32 %v16, %v77
  %v81 = vadd.f32 %v17, %v79
  %82 = vrot.lane.b32.xlu0 %v80, 126
  %v83 = vpop.permute.xlu0 %82
  %84 = vrot.lane.b32.xlu0 %v81, 126
  %v85 = vpop.permute.xlu0 %84
  %v86 = vadd.f32 %v80, %v83
  %v87 = vadd.f32 %v81, %v85
  %v88 = vrot.slane %v86, 1
  %v89 = vrot.slane %v87, 1
  %v90 = vsel %vm34, %v88, %v89
  %v91 = vsel %vm34, %v89, %v88
  %v92 = vadd.f32 %v86, %v90
  %v93 = vadd.f32 %v87, %v91
  %v94 = vrot.slane %v92, 2
  %v95 = vrot.slane %v93, 2
  %v96 = vsel %vm41, %v94, %v95
  %v97 = vsel %vm41, %v95, %v94
  %v98 = vadd.f32 %v92, %v96
  %v99 = vadd.f32 %v93, %v97
  %v100 = vmul.f32 %v98, 0.0625
  %v101 = vmul.f32 %v99, 0.0625
  %v102 = vmul.f32 %v16, %v16
  %v103 = vmul.f32 %v17, %v17
  %104 = vrot.lane.b32.xlu0 %v102, 127
  %v105 = vpop.permute.xlu0 %104
  %106 = vrot.lane.b32.xlu0 %v103, 127
  %v107 = vpop.permute.xlu0 %106
  %v108 = vadd.f32 %v102, %v105
  %v109 = vadd.f32 %v103, %v107
  %110 = vrot.lane.b32.xlu0 %v108, 126
  %v111 = vpop.permute.xlu0 %110
  %112 = vrot.lane.b32.xlu0 %v109, 126
  %v113 = vpop.permute.xlu0 %112
  %v114 = vadd.f32 %v108, %v111
  %v115 = vadd.f32 %v109, %v113
  %v116 = vrot.slane %v114, 1
  %v117 = vrot.slane %v115, 1
  %v118 = vsel %vm34, %v116, %v117
  %v119 = vsel %vm34, %v117, %v116
  %v120 = vadd.f32 %v114, %v118
  %v121 = vadd.f32 %v115, %v119
  %v122 = vrot.slane %v120, 2
  %v123 = vrot.slane %v121, 2
  %v124 = vsel %vm41, %v122, %v123
  %v125 = vsel %vm41, %v123, %v122
  %v126 = vadd.f32 %v120, %v124
  %v127 = vadd.f32 %v121, %v125
  %v128 = vmul.f32 %v126, 0.0625
  %v129 = vmul.f32 %v127, 0.0625
  %v130 = vmul.f32 %v46, %v46
  %v131 = vmul.f32 %v47, %v47
  %v132 = vsub.f32 %v74, %v130
  %v133 = vsub.f32 %v75, %v131
  %v134 = vmax.f32 %v132, 0.0
  %v135 = vmax.f32 %v133, 0.0
  %v136 = vmul.f32 %v100, %v100
  %v137 = vmul.f32 %v101, %v101
  %v138 = vsub.f32 %v128, %v136
  %v139 = vsub.f32 %v129, %v137
  %v140 = vmax.f32 %v138, 0.0
  %v141 = vmax.f32 %v139, 0.0
  %v142 = vrsqrt.pop %v134
  %v143 = vmul.f32 %v134, %v142
  %vm144 = vcmp.eq.f32.partialorder %v134, inf
  %v145 = vsel %vm144, %v134, %v143
  %vm146 = vcmp.eq.f32.partialorder %v134, 0.0
  %v147 = vand.u32 %v134, 2147483648
  %v148 = vsel %vm146, %v147, %v145
  %v149 = vrsqrt.pop %v135
  %v150 = vmul.f32 %v135, %v149
  %vm151 = vcmp.eq.f32.partialorder %v135, inf
  %v152 = vsel %vm151, %v135, %v150
  %vm153 = vcmp.eq.f32.partialorder %v135, 0.0
  %v154 = vand.u32 %v135, 2147483648
  %v155 = vsel %vm153, %v154, %v152
  %v156 = vadd.f32 %v148, 0.0001
  %v157 = vadd.f32 %v155, 0.0001
  %v158 = vrsqrt.pop %v140
  %v159 = vmul.f32 %v140, %v158
  %vm160 = vcmp.eq.f32.partialorder %v140, inf
  %v161 = vsel %vm160, %v140, %v159
  %vm162 = vcmp.eq.f32.partialorder %v140, 0.0
  %v163 = vand.u32 %v140, 2147483648
  %v164 = vsel %vm162, %v163, %v161
  %v165 = vrsqrt.pop %v141
  %v166 = vmul.f32 %v141, %v165
  %vm167 = vcmp.eq.f32.partialorder %v141, inf
  %v168 = vsel %vm167, %v141, %v166
  %vm169 = vcmp.eq.f32.partialorder %v141, 0.0
  %v170 = vand.u32 %v141, 2147483648
  %v171 = vsel %vm169, %v170, %v168
  %v172 = vadd.f32 %v164, 0.0001
  %v173 = vadd.f32 %v171, 0.0001
  %v174 = vmul.f32 %v156, %v156
  %v175 = vmul.f32 %v157, %v157
  %v176 = vrcp.pop %v174
  %v177 = vrcp.pop %v175
  %v178 = vmul.f32 %v176, 0.5
  %v179 = vmul.f32 %v177, 0.5
  %v180 = vsub.f32 %v46, %v100
  %v181 = vsub.f32 %v47, %v101
  %v182 = vmul.f32 %v172, %v172
  %v183 = vmul.f32 %v173, %v173
  %v184 = vmul.f32 %v180, %v180
  %v185 = vmul.f32 %v181, %v181
  %v186 = vadd.f32 %v182, %v184
  %v187 = vadd.f32 %v183, %v185
  %v188 = vmul.f32 %v186, %v178
  %v189 = vmul.f32 %v187, %v179
  %v190 = vrcp.pop %v172
  %v191 = vrcp.pop %v173
  %v192 = vmul.f32 %v156, %v190
  %v193 = vmul.f32 %v157, %v191
  %v194 = vlog2.pop %v192
  %v195 = vmul.f32 %v194, 0.6931472
  %v196 = vlog2.pop %v193
  %v197 = vmul.f32 %v196, 0.6931472
  %v198 = vadd.f32 %v188, %v195
  %v199 = vadd.f32 %v189, %v197
  %v200 = vsub.f32 %v198, 0.5
  %v201 = vsub.f32 %v199, 0.5
  %v202 = vld [vmem:[%s2] sm:$0xff]
  %v203 = vld [vmem:[%s2 + $0x8] sm:$0xff]
  %v204 = vmul.f32 %v200, %v202
  %v205 = vmul.f32 %v201, %v203
  %v206 = vadd.f32 %v204, %v205
  %v207 = vrot.slane %v206, 4
  %v208 = vadd.f32 %v206, %v207
  %v209 = vrot.slane %v208, 2
  %v210 = vadd.f32 %v208, %v209
  %v211 = vrot.slane %v210, 1
  %v212 = vadd.f32 %v210, %v211
  %213 = vst [vmem:[%s3] sm:$0x1] %v212
  // Predicated region
  $region14: #{local_stat_loss.1} parent=0 // pred_check
    _
  $region15: #{local_stat_loss.1} parent=0 // pred_check_branch
    %215 = sbr.rel (0) target = $region17
  $region16: #{local_stat_loss.1} parent=0 // pred_region
    _
  $region17: #{local_stat_loss.1} parent=0 // pred_fallthru
    _
  // Predicated region
  $region18: #{local_stat_loss.1} parent=0 // pred_check
    _
  $region19: #{local_stat_loss.1} parent=0 // pred_check_branch
    %217 = sbr.rel (0) target = $region21
  $region20: #{local_stat_loss.1} parent=0 // pred_region
    _
  $region21: #{local_stat_loss.1} parent=0 // pred_fallthru
    _

</llo_original>
